<compile_context>
chip_gen: v7x
topology: tpu7x:2x2x1
jax: 0.10.0
libtpu: 0.0.40
codegen_flags: <defaults>
</compile_context>

<pallas_src>
import functools

import jax
import jax.numpy as jnp
from jax.experimental import pallas as pl
from jax.experimental.pallas import tpu as pltpu


def _ln_kernel_bias(x_ref, w_ref, b_ref, o_ref, *, eps):
    # x_ref: (tm, D) rows, w_ref/b_ref: (1, D)
    x = x_ref[...].astype(jnp.float32)
    inv_d = 1.0 / x.shape[-1]
    mean = jnp.sum(x, axis=-1, keepdims=True) * inv_d
    xc = x - mean
    var = jnp.sum(xc * xc, axis=-1, keepdims=True) * inv_d  # biased var (F.layer_norm)
    inv = jax.lax.rsqrt(var + eps)
    y = xc * inv * w_ref[...].astype(jnp.float32) + b_ref[...].astype(jnp.float32)
    o_ref[...] = y.astype(o_ref.dtype)


def _ln_kernel_nobias(x_ref, w_ref, o_ref, *, eps):
    x = x_ref[...].astype(jnp.float32)
    inv_d = 1.0 / x.shape[-1]
    mean = jnp.sum(x, axis=-1, keepdims=True) * inv_d
    xc = x - mean
    var = jnp.sum(xc * xc, axis=-1, keepdims=True) * inv_d
    inv = jax.lax.rsqrt(var + eps)
    y = xc * inv * w_ref[...].astype(jnp.float32)
    o_ref[...] = y.astype(o_ref.dtype)


def _vmem_limit_bytes():
    # ~0.75x of physical VMEM: headroom for the f32 intermediates / internal
    # scratch without letting Mosaic spill.  v5e/v6e: 128 MiB -> 96 MiB;
    # v7x: 64 MiB -> 48 MiB.
    try:
        phys = pltpu.get_tpu_info().vmem_capacity_bytes
    except Exception:
        phys = 64 << 20  # conservative default (works everywhere)
    return int(phys * 3 // 4)


def _pick_row_tile(N, D, dtype):
    """Pick the row-tile size tm (always a multiple of the sublane count)."""
    itemsize = jnp.dtype(dtype).itemsize
    sub = 16 if itemsize == 2 else 8  # sublane multiple: 8 for 32-bit, 16 for bf16/fp16

    # Mem-bound kernels hit ~85% of HBM roofline already at 1-4 MiB tiles,
    # so target a ~4 MiB input slab -- and independently cap the in-kernel
    # f32 working set (tm*D*4 for x.astype(f32)/xc/y) at ~2 MiB, which is the
    # constraint that matters on v7x's 64 MiB VMEM (esp. for bf16 inputs).
    slab_target = 4 << 20
    f32_ws_cap = 2 << 20
    tm_slab = slab_target // max(D * itemsize, 1)
    tm_f32 = f32_ws_cap // max(D * 4, 1)
    tm = max(sub, (min(tm_slab, tm_f32) // sub) * sub)

    # Keep >= ~8 grid steps when there are enough rows so v7x's two
    # TensorCores each get >= 4 steps and the double buffer actually
    # pipelines (per-step overhead is only ~0.35 us).
    n_round = pl.cdiv(N, sub) * sub
    if n_round >= 8 * sub:
        tm = min(tm, max(sub, ((n_round // 8) // sub) * sub))

    return min(tm, n_round)


def layer_norm_pallas(x, weight, bias=None, *, eps=1e-5):
    """LayerNorm over the last dim of x.  x: (..., D)."""
    orig_shape = x.shape
    D = orig_shape[-1]
    x2 = x.reshape(-1, D)
    N = x2.shape[0]

    tm = _pick_row_tile(N, D, x.dtype)
    n_blocks = pl.cdiv(N, tm)  # final block may be partial: reads are OOB-
    # masked (undefined but row-local), writes to OOB rows are dropped.

    w2 = weight.reshape(1, D)

    x_spec = pl.BlockSpec((tm, D), lambda i: (i, 0))
    w_spec = pl.BlockSpec((1, D), lambda i: (0, 0))
    out_spec = pl.BlockSpec((tm, D), lambda i: (i, 0))

    if bias is None:
        kernel = functools.partial(_ln_kernel_nobias, eps=eps)
        in_specs = [x_spec, w_spec]
        args = (x2, w2)
    else:
        kernel = functools.partial(_ln_kernel_bias, eps=eps)
        in_specs = [x_spec, w_spec, w_spec]
        args = (x2, w2, bias.reshape(1, D))

    out = pl.pallas_call(
        kernel,
        out_shape=jax.ShapeDtypeStruct((N, D), x.dtype),
        grid_spec=pltpu.PrefetchScalarGridSpec(
            num_scalar_prefetch=0,
            grid=(n_blocks,),
            in_specs=in_specs,
            out_specs=out_spec,
        ),
        compiler_params=pltpu.CompilerParams(
            dimension_semantics=("parallel",),
            vmem_limit_bytes=_vmem_limit_bytes(),
        ),
    )(*args)

    return out.reshape(orig_shape)


def layer_norm_ref(x, weight, bias, eps=1e-5):
    xf = x.astype(jnp.float32)
    mean = jnp.mean(xf, axis=-1, keepdims=True)
    var = jnp.mean((xf - mean) ** 2, axis=-1, keepdims=True)
    y = (xf - mean) / jnp.sqrt(var + eps)
    y = y * weight.astype(jnp.float32)
    if bias is not None:
        y = y + bias.astype(jnp.float32)
    return y.astype(x.dtype)


if __name__ == "__main__":
    B, T, D = 2, 8, 32
    key = jax.random.PRNGKey(0)
    kx, kw, kb = jax.random.split(key, 3)

    x = jax.random.normal(kx, (B, T, D), dtype=jnp.float32)

    # Module init is ones/zeros; perturb so the affine part is exercised.
    weight = jnp.ones((D,), dtype=jnp.float32) + 0.1 * jax.random.normal(
        kw, (D,), dtype=jnp.float32
    )
    bias = 0.1 * jax.random.normal(kb, (D,), dtype=jnp.float32)

    # bias=True path
    out = layer_norm_pallas(x, weight, bias)
    out = jax.block_until_ready(out)
    ref = layer_norm_ref(x, weight, bias)
    assert jnp.allclose(out, ref, atol=1e-5, rtol=1e-5), "bias=True mismatch"

    # bias=False path (module allows bias=None)
    out_nb = layer_norm_pallas(x, weight, None)
    out_nb = jax.block_until_ready(out_nb)
    ref_nb = layer_norm_ref(x, weight, None)
    assert jnp.allclose(out_nb, ref_nb, atol=1e-5, rtol=1e-5), "bias=False mismatch"

    # Non-tile-aligned row count (partial final block, no pad/slice): N = 14.
    x_odd = jax.random.normal(kx, (2, 7, D), dtype=jnp.float32)
    out_odd = jax.block_until_ready(layer_norm_pallas(x_odd, weight, bias))
    ref_odd = layer_norm_ref(x_odd, weight, bias)
    assert jnp.allclose(out_odd, ref_odd, atol=1e-5, rtol=1e-5), "partial-block mismatch"
    assert jnp.all(jnp.isfinite(out_odd)), "NaN/Inf leaked from masked OOB rows"

    print("KERNEL_OK")
</pallas_src>

<mosaic_0001>
module attributes {stable_mosaic.version = 11 : i64} {
  func.func @_ln_kernel_bias(%arg0: i32, %arg1: memref<16x32xf32, #tpu.memory_space<vmem>>, %arg2: memref<1x32xf32, #tpu.memory_space<vmem>>, %arg3: memref<1x32xf32, #tpu.memory_space<vmem>>, %arg4: memref<16x32xf32, #tpu.memory_space<vmem>>) attributes {dimension_semantics = [#tpu.dimension_semantics<parallel>], iteration_bounds = array<i64: 1>, scalar_prefetch = 0 : i64, scratch_operands = 0 : i64, tpu.core_type = #tpu.core_type<tc>, window_params = [{transform_indices = @transform_0, window_bounds = array<i64: 16, 32>}, {pipeline_mode = #tpu.pipeline_mode<synchronous>, transform_indices = @transform_1, window_bounds = array<i64: 1, 32>}, {pipeline_mode = #tpu.pipeline_mode<synchronous>, transform_indices = @transform_2, window_bounds = array<i64: 1, 32>}, {transform_indices = @transform_3, window_bounds = array<i64: 16, 32>}]} {
    %c0 = arith.constant 0 : index
    %c0_0 = arith.constant 0 : index
    %0 = vector.load %arg1[%c0, %c0_0] : memref<16x32xf32, #tpu.memory_space<vmem>>, vector<16x32xf32>
    %cst = arith.constant dense<0.000000e+00> : vector<16xf32>
    %1 = vector.multi_reduction <add>, %0, %cst [1] : vector<16x32xf32> to vector<16xf32>
    %2 = vector.shape_cast %1 : vector<16xf32> to vector<16x1xf32>
    %cst_1 = arith.constant 3.125000e-02 : f32
    %3 = vector.broadcast %cst_1 : f32 to vector<16x1xf32>
    %4 = arith.mulf %2, %3 : vector<16x1xf32>
    %5 = vector.broadcast %4 : vector<16x1xf32> to vector<16x32xf32>
    %6 = arith.subf %0, %5 : vector<16x32xf32>
    %7 = arith.mulf %6, %6 : vector<16x32xf32>
    %cst_2 = arith.constant dense<0.000000e+00> : vector<16xf32>
    %8 = vector.multi_reduction <add>, %7, %cst_2 [1] : vector<16x32xf32> to vector<16xf32>
    %9 = vector.shape_cast %8 : vector<16xf32> to vector<16x1xf32>
    %cst_3 = arith.constant 3.125000e-02 : f32
    %10 = vector.broadcast %cst_3 : f32 to vector<16x1xf32>
    %11 = arith.mulf %9, %10 : vector<16x1xf32>
    %cst_4 = arith.constant 9.99999974E-6 : f32
    %12 = vector.broadcast %cst_4 : f32 to vector<16x1xf32>
    %13 = arith.addf %11, %12 : vector<16x1xf32>
    %14 = math.rsqrt %13 : vector<16x1xf32>
    %15 = vector.broadcast %14 : vector<16x1xf32> to vector<16x32xf32>
    %16 = arith.mulf %6, %15 : vector<16x32xf32>
    %c0_5 = arith.constant 0 : index
    %c0_6 = arith.constant 0 : index
    %17 = vector.load %arg2[%c0_5, %c0_6] : memref<1x32xf32, #tpu.memory_space<vmem>>, vector<1x32xf32>
    %18 = vector.broadcast %17 : vector<1x32xf32> to vector<16x32xf32>
    %19 = arith.mulf %16, %18 : vector<16x32xf32>
    %c0_7 = arith.constant 0 : index
    %c0_8 = arith.constant 0 : index
    %20 = vector.load %arg3[%c0_7, %c0_8] : memref<1x32xf32, #tpu.memory_space<vmem>>, vector<1x32xf32>
    %21 = vector.broadcast %20 : vector<1x32xf32> to vector<16x32xf32>
    %22 = arith.addf %19, %21 : vector<16x32xf32>
    %c0_9 = arith.constant 0 : index
    %c0_10 = arith.constant 0 : index
    %23 = vector.load %arg4[%c0_9, %c0_10] : memref<16x32xf32, #tpu.memory_space<vmem>>, vector<16x32xf32>
    tpu.vector_store %arg4[%c0_9, %c0_10], %22 {strides = array<i32>} : memref<16x32xf32, #tpu.memory_space<vmem>>, vector<16x32xf32>,
    return
  }
  func.func @transform_0(%arg0: i32) -> (i32, i32) {
    %c0_i32 = arith.constant 0 : i32
    %c0_i32_0 = arith.constant 0 : i32
    return %arg0, %c0_i32 : i32, i32
  }
  func.func @transform_1(%arg0: i32) -> (i32, i32) {
    %c0_i32 = arith.constant 0 : i32
    %c0_i32_0 = arith.constant 0 : i32
    %c0_i32_1 = arith.constant 0 : i32
    return %c0_i32, %c0_i32_0 : i32, i32
  }
  func.func @transform_2(%arg0: i32) -> (i32, i32) {
    %c0_i32 = arith.constant 0 : i32
    %c0_i32_0 = arith.constant 0 : i32
    %c0_i32_1 = arith.constant 0 : i32
    return %c0_i32, %c0_i32_0 : i32, i32
  }
  func.func @transform_3(%arg0: i32) -> (i32, i32) {
    %c0_i32 = arith.constant 0 : i32
    %c0_i32_0 = arith.constant 0 : i32
    return %arg0, %c0_i32 : i32, i32
  }
}

</mosaic_0001>

<llo_original>
// kernel: tpu_custom_call.1
$region0: #{tpu_custom_call.1}
  #allocation0 [shape = 'u32[]', space=smem, size = 0x4, offset = 0x4, fixed_abs, tag = 'smem constant byte address 0x4 - core index']
  #allocation1 [shape = 'u32[144,128]{1,0:T(1,128)}', space=vmem, size = 0x12000, scoped, tag = 'internal scratch']
  %s0 = inlined_call_operand.hbm [shape: f32[16,32], index: 0, kind: input, shape index: {}]
  %s1 = inlined_call_operand.vmem [shape: f32[1,32], index: 1, kind: input, shape index: {}]
  %s2 = inlined_call_operand.vmem [shape: f32[1,32], index: 2, kind: input, shape index: {}]
  %s3 = inlined_call_operand.hbm [shape: f32[16,32], index: 3, kind: output, shape index: {}]
  %s4 = sld [smem:[#allocation0]]
  $region26: #{tpu_custom_call.1} parent=0
    _
  %s6 = ssub.s32 1, %s4
  %s7 = scalar_select 0, %s6, %s4
  $region1: #{tpu_custom_call.1} parent=0
    #allocation2 [shape = 'u8[8192]{0}', space=vmem, size = 0x2000, scoped, tag = 'input window, operand 0, single buffered']
    #allocation3 [shape = 's32[1]{0}', space=sflag, size = 0x4, scoped, tag = 'scoped memory for tpu_custom_call.1']
    #allocation4 [shape = 's32[1]{0}', space=sflag, size = 0x4, scoped, tag = 'scoped memory for tpu_custom_call.1']
    #allocation5 [shape = 'u8[8192]{0}', space=vmem, size = 0x2000, scoped, tag = 'output window, operand 0, single buffered']
    %8 = vsyncpa [#allocation3], 0
    %9 = vsyncpa [#allocation4], 0
    // Predicated region
    $region2: #{tpu_custom_call.1} parent=1 // pred_check
      _
    $region3: #{tpu_custom_call.1} parent=1 // pred_check_branch
      %11 = sbr.rel (0) target = $region5
    $region4: #{tpu_custom_call.1} parent=1 // pred_region
      %s13 = ssub.s32 256, 256
      %14 = vsyncadd [#allocation3], %s13
      %s15 = sshll.u32 [#allocation2], 4
      %s16 = int_to_ptr.vmem [resolvable:$true] %s15
      %21 = dma.hbm_to_vmem [thread:$0]  %s0, 256, %s16, [#allocation3], 128, 128, 8
    $region5: #{tpu_custom_call.1} parent=1 // pred_fallthru
      _
    // Predicated region
    $region6: #{tpu_custom_call.1} parent=1 // pred_check
      _
    $region7: #{tpu_custom_call.1} parent=1 // pred_check_branch
      %23 = sbr.rel (0) target = $region9
    $region8: #{tpu_custom_call.1} parent=1 // pred_region
      _
    $region9: #{tpu_custom_call.1} parent=1 // pred_fallthru
      _
    // Predicated region
    $region10: #{tpu_custom_call.1} parent=1 // pred_check
      _
    $region11: #{tpu_custom_call.1} parent=1 // pred_check_branch
      %25 = sbr.rel (0) target = $region13
    $region12: #{tpu_custom_call.1} parent=1 // pred_region
      _
    $region13: #{tpu_custom_call.1} parent=1 // pred_fallthru
      _
    // Predicated region
    $region14: #{tpu_custom_call.1} parent=1 // pred_check
      _
    $region15: #{tpu_custom_call.1} parent=1 // pred_check_branch
      %27 = sbr.rel (0) target = $region17
    $region16: #{tpu_custom_call.1} parent=1 // pred_region
      %28 = dma.done [#allocation3], 256
    $region17: #{tpu_custom_call.1} parent=1 // pred_fallthru
      _
    %v29 = vld [vmem:[#allocation2] sm:$0xff]
    %v30 = vld [vmem:[#allocation2 + $0x8] sm:$0xff]
    %vm31 = vcmask 261120
    %v32 = vsel %vm31, %v29, 0.0
    %33 = vadd.xlane.f32.xlu0 %v32
    %v34 = vpop.xlane.xlu0 %33
    %v35 = vsel %vm31, %v30, 0.0
    %36 = vadd.xlane.f32.xlu0 %v35
    %v37 = vpop.xlane.xlu0 %36
    %v38 = vmul.f32 %v34, 0.03125
    %v39 = vmul.f32 %v37, 0.03125
    %v40 = vsub.f32 %v29, %v38
    %v41 = vsub.f32 %v30, %v39
    %v42 = vmul.f32 %v40, %v40
    %v43 = vmul.f32 %v41, %v41
    %v44 = vsel %vm31, %v42, 0.0
    %45 = vadd.xlane.f32.xlu0 %v44
    %v46 = vpop.xlane.xlu0 %45
    %v47 = vsel %vm31, %v43, 0.0
    %48 = vadd.xlane.f32.xlu0 %v47
    %v49 = vpop.xlane.xlu0 %48
    %v50 = vmul.f32 %v46, 0.03125
    %v51 = vmul.f32 %v49, 0.03125
    %v52 = vadd.f32 %v50, 1e-05
    %v53 = vadd.f32 %v51, 1e-05
    %v54 = vrsqrt.pop %v52
    %v55 = vrsqrt.pop %v53
    %v56 = vmul.f32 %v40, %v54
    %v57 = vmul.f32 %v41, %v55
    %v58 = vld [vmem:[%s1] sm:$0x1]
    %v60 = vlaneseq
    %v61 = vshrl.u32 %v60, 7
    %v62 = vsub.s32 0, %v61
    %v63 = vrot.slane %v58, %v62
    %v65 = vmul.f32 %v56, %v63
    %v66 = vmul.f32 %v57, %v63
    %v67 = vld [vmem:[%s2] sm:$0x1]
    %v69 = vlaneseq
    %v70 = vshrl.u32 %v69, 7
    %v71 = vsub.s32 0, %v70
    %v72 = vrot.slane %v67, %v71
    %v74 = vadd.f32 %v65, %v72
    %v75 = vadd.f32 %v66, %v72
    %76 = vst.msk [vmem:[#allocation5] sm:$0xff] %vm31, %v74
    %77 = vst.msk [vmem:[#allocation5 + $0x8] sm:$0xff] %vm31, %v75
    // Predicated region
    $region18: #{tpu_custom_call.1} parent=1 // pred_check
      _
    $region19: #{tpu_custom_call.1} parent=1 // pred_check_branch
      %79 = sbr.rel (0) target = $region21
    $region20: #{tpu_custom_call.1} parent=1 // pred_region
      %s81 = ssub.s32 256, 256
      %82 = vsyncadd [#allocation4], %s81
      %s83 = sshll.u32 [#allocation5], 4
      %s84 = int_to_ptr.vmem [resolvable:$true] %s83
      %89 = dma.vmem_to_hbm [thread:$0]  %s84, 256, %s3, [#allocation4], 128, 128, 8
    $region21: #{tpu_custom_call.1} parent=1 // pred_fallthru
      _
    // Predicated region
    $region22: #{tpu_custom_call.1} parent=1 // pred_check
      _
    $region23: #{tpu_custom_call.1} parent=1 // pred_check_branch
      %91 = sbr.rel (0) target = $region25
    $region24: #{tpu_custom_call.1} parent=1 // pred_region
      %92 = dma.done [#allocation4], 256
    $region25: #{tpu_custom_call.1} parent=1 // pred_fallthru
      _
    %93 = vsyncpa [#allocation3], 1
    %94 = vsyncpa [#allocation4], 1

</llo_original>
